<compile_context>
chip_gen: v7x
topology: tpu7x:2x2x1
jax: 0.10.0
libtpu: 0.0.40
codegen_flags: <defaults>
</compile_context>

<pallas_src>
import jax
import jax.numpy as jnp
from jax.experimental import pallas as pl
from jax.experimental.pallas import tpu as pltpu


# ------------------------------ Pallas kernel -------------------------------

def _ffn_kernel(x_ref, w1_ref, b1_ref, w2_ref, o_ref):
    """Fused: h = silu(x @ w1 + b1); y = h @ w2 + x."""
    x = x_ref[...]                                   # (tm, Cp) f32 (residual)
    h = jnp.dot(x.astype(jnp.bfloat16), w1_ref[...],
                preferred_element_type=jnp.float32) + b1_ref[...]
    h = h * jax.nn.sigmoid(h)                        # SiLU (sigmoid on EUP)
    y = jnp.dot(h.astype(jnp.bfloat16), w2_ref[...],
                preferred_element_type=jnp.float32)
    o_ref[...] = (y + x).astype(o_ref.dtype)         # residual add, f32 epilogue


def _round_up(x, m):
    return (x + m - 1) // m * m


# -------------------------------- JAX glue ----------------------------------

def feed_forward_block(x_nchw, params, eps=1e-5):
    """Forward pass of FeedForwardBlock (inference semantics).

    x_nchw: (N, C, H, W) f32
    params: {'bn': (gamma, beta, running_mean, running_var),
             'fc1_w': (C*exp, C, 1, 1), 'fc2_w': (C, C*exp, 1, 1)}
    """
    gamma, beta, mean, var = params['bn']
    w1 = params['fc1_w']
    w2 = params['fc2_w']
    N, C, H, W = x_nchw.shape
    Hd = w1.shape[0]                                  # hidden = C * expansion

    # Fold eval-mode BN into fc1:  BN(x) @ W1 = x @ (s * W1) + (b @ W1)
    s = gamma / jnp.sqrt(var + eps)
    b = beta - mean * s
    w1m = jnp.transpose(w1.reshape(Hd, C))            # (C, Hd)
    w2m = jnp.transpose(w2.reshape(C, Hd))            # (Hd, C)
    w1f = w1m * s[:, None]                            # BN scale folded into W1
    b1 = b @ w1m                                      # BN bias folded -> (Hd,)

    # 1x1 convs are channel matmuls: NCHW -> NHWC -> (M, C)
    x2 = jnp.transpose(x_nchw, (0, 2, 3, 1)).reshape(N * H * W, C)
    M = N * H * W

    # Lane-dense padding for channel dims; row padding to the tile size.
    Cp = _round_up(C, 128)
    Hp = _round_up(Hd, 128)
    M_pad = _round_up(M, 8)
    tm = 256 if (M_pad >= 512 and M_pad % 256 == 0) else min(128, M_pad)
    M_pad = _round_up(M_pad, tm)

    xp = jnp.pad(x2, ((0, M_pad - M), (0, Cp - C)))
    w1p = jnp.pad(w1f, ((0, Cp - C), (0, Hp - Hd))).astype(jnp.bfloat16)
    b1p = jnp.pad(b1, (0, Hp - Hd)).reshape(1, Hp).astype(jnp.float32)
    w2p = jnp.pad(w2m, ((0, Hp - Hd), (0, Cp - C))).astype(jnp.bfloat16)

    out = pl.pallas_call(
        _ffn_kernel,
        out_shape=jax.ShapeDtypeStruct((M_pad, Cp), jnp.float32),
        grid=(M_pad // tm,),
        in_specs=[
            pl.BlockSpec((tm, Cp), lambda i: (i, 0)),   # x tile (also residual)
            pl.BlockSpec((Cp, Hp), lambda i: (0, 0)),   # fc1 weight (BN folded)
            pl.BlockSpec((1, Hp), lambda i: (0, 0)),    # fc1 folded bias
            pl.BlockSpec((Hp, Cp), lambda i: (0, 0)),   # fc2 weight
        ],
        out_specs=pl.BlockSpec((tm, Cp), lambda i: (i, 0)),
        compiler_params=pltpu.CompilerParams(
            dimension_semantics=("parallel",)),
    )(xp, w1p, b1p, w2p)

    y = out[:M, :C].reshape(N, H, W, C)
    return jnp.transpose(y, (0, 3, 1, 2))              # back to NCHW


# ----------------------------- pure-JAX reference ----------------------------

def reference(x, params, eps=1e-5):
    gamma, beta, mean, var = params['bn']
    w1 = params['fc1_w'].reshape(params['fc1_w'].shape[0], -1)   # (Hd, C)
    w2 = params['fc2_w'].reshape(params['fc2_w'].shape[0], -1)   # (C, Hd)
    xn = (x - mean[None, :, None, None]) * (
        gamma / jnp.sqrt(var + eps))[None, :, None, None] + beta[None, :, None, None]
    h = jnp.einsum('nchw,oc->nohw', xn, w1)
    h = h * jax.nn.sigmoid(h)                          # SiLU
    y = jnp.einsum('nohw,co->nchw', h, w2)
    return y + x                                       # dropout = identity (eval)


# ---------------------------------- main -------------------------------------

if __name__ == "__main__":
    key = jax.random.PRNGKey(0)
    kx, k1, k2, kg, kb, km, kv = jax.random.split(key, 7)

    N, C, Hs, Ws = 2, 32, 16, 16          # small shapes consistent with module
    expansion = 4
    Hd = C * expansion                    # hidden_dim = 128

    x = jax.random.normal(kx, (N, C, Hs, Ws), jnp.float32)
    params = {
        'bn': (1.0 + 0.1 * jax.random.normal(kg, (C,), jnp.float32),
               0.1 * jax.random.normal(kb, (C,), jnp.float32),
               0.1 * jax.random.normal(km, (C,), jnp.float32),
               jnp.abs(1.0 + 0.1 * jax.random.normal(kv, (C,), jnp.float32))),
        'fc1_w': 0.05 * jax.random.normal(k1, (Hd, C, 1, 1), jnp.float32),
        'fc2_w': 0.05 * jax.random.normal(k2, (C, Hd, 1, 1), jnp.float32),
    }

    fwd = jax.jit(feed_forward_block)
    y = fwd(x, params)
    jax.block_until_ready(y)
    assert y.shape == x.shape, y.shape

    y_ref = reference(x, params)
    err = float(jnp.max(jnp.abs(y - y_ref)))
    assert err < 5e-2, f"max abs error {err}"
    print("KERNEL_OK")
</pallas_src>

<mosaic_0001>
module attributes {stable_mosaic.version = 11 : i64} {
  func.func @_ffn_kernel(%arg0: i32, %arg1: memref<256x128xf32, #tpu.memory_space<vmem>>, %arg2: memref<128x128xbf16, #tpu.memory_space<vmem>>, %arg3: memref<1x128xf32, #tpu.memory_space<vmem>>, %arg4: memref<128x128xbf16, #tpu.memory_space<vmem>>, %arg5: memref<256x128xf32, #tpu.memory_space<vmem>>) attributes {dimension_semantics = [#tpu.dimension_semantics<parallel>], iteration_bounds = array<i64: 2>, scalar_prefetch = 0 : i64, scratch_operands = 0 : i64, tpu.core_type = #tpu.core_type<tc>, window_params = [{transform_indices = @transform_0, window_bounds = array<i64: 256, 128>}, {pipeline_mode = #tpu.pipeline_mode<synchronous>, transform_indices = @transform_1, window_bounds = array<i64: 128, 128>}, {pipeline_mode = #tpu.pipeline_mode<synchronous>, transform_indices = @transform_2, window_bounds = array<i64: 1, 128>}, {pipeline_mode = #tpu.pipeline_mode<synchronous>, transform_indices = @transform_3, window_bounds = array<i64: 128, 128>}, {transform_indices = @transform_4, window_bounds = array<i64: 256, 128>}]} {
    %c0 = arith.constant 0 : index
    %c0_0 = arith.constant 0 : index
    %0 = vector.load %arg1[%c0, %c0_0] : memref<256x128xf32, #tpu.memory_space<vmem>>, vector<256x128xf32>
    %1 = arith.truncf %0 : vector<256x128xf32> to vector<256x128xbf16>
    %c0_1 = arith.constant 0 : index
    %c0_2 = arith.constant 0 : index
    %2 = vector.load %arg2[%c0_1, %c0_2] : memref<128x128xbf16, #tpu.memory_space<vmem>>, vector<128x128xbf16>
    %cst = arith.constant dense<0.000000e+00> : vector<256x128xf32>
    %3 = tpu.matmul %1, %2, %cst {dimension_numbers = #tpu.dot_dimension_numbers<[1], [0], [0], [1], [0, 0, 1, 1], [], []>} : vector<256x128xbf16>, vector<128x128xbf16>, vector<256x128xf32> -> vector<256x128xf32>
    %c0_3 = arith.constant 0 : index
    %c0_4 = arith.constant 0 : index
    %4 = vector.load %arg3[%c0_3, %c0_4] : memref<1x128xf32, #tpu.memory_space<vmem>>, vector<1x128xf32>
    %5 = vector.broadcast %4 : vector<1x128xf32> to vector<256x128xf32>
    %6 = arith.addf %3, %5 : vector<256x128xf32>
    %7 = arith.negf %6 : vector<256x128xf32>
    %8 = math.exp %7 : vector<256x128xf32>
    %cst_5 = arith.constant 1.000000e+00 : f32
    %9 = vector.broadcast %cst_5 : f32 to vector<256x128xf32>
    %10 = arith.addf %9, %8 : vector<256x128xf32>
    %11 = arith.divf %9, %10 : vector<256x128xf32>
    %12 = arith.mulf %6, %11 : vector<256x128xf32>
    %13 = arith.truncf %12 : vector<256x128xf32> to vector<256x128xbf16>
    %c0_6 = arith.constant 0 : index
    %c0_7 = arith.constant 0 : index
    %14 = vector.load %arg4[%c0_6, %c0_7] : memref<128x128xbf16, #tpu.memory_space<vmem>>, vector<128x128xbf16>
    %cst_8 = arith.constant dense<0.000000e+00> : vector<256x128xf32>
    %15 = tpu.matmul %13, %14, %cst_8 {dimension_numbers = #tpu.dot_dimension_numbers<[1], [0], [0], [1], [0, 0, 1, 1], [], []>} : vector<256x128xbf16>, vector<128x128xbf16>, vector<256x128xf32> -> vector<256x128xf32>
    %16 = arith.addf %15, %0 : vector<256x128xf32>
    %c0_9 = arith.constant 0 : index
    %c0_10 = arith.constant 0 : index
    %17 = vector.load %arg5[%c0_9, %c0_10] : memref<256x128xf32, #tpu.memory_space<vmem>>, vector<256x128xf32>
    tpu.vector_store %arg5[%c0_9, %c0_10], %16 {strides = array<i32>} : memref<256x128xf32, #tpu.memory_space<vmem>>, vector<256x128xf32>,
    return
  }
  func.func @transform_0(%arg0: i32) -> (i32, i32) {
    %c0_i32 = arith.constant 0 : i32
    %c0_i32_0 = arith.constant 0 : i32
    return %arg0, %c0_i32 : i32, i32
  }
  func.func @transform_1(%arg0: i32) -> (i32, i32) {
    %c0_i32 = arith.constant 0 : i32
    %c0_i32_0 = arith.constant 0 : i32
    %c0_i32_1 = arith.constant 0 : i32
    return %c0_i32, %c0_i32_0 : i32, i32
  }
  func.func @transform_2(%arg0: i32) -> (i32, i32) {
    %c0_i32 = arith.constant 0 : i32
    %c0_i32_0 = arith.constant 0 : i32
    %c0_i32_1 = arith.constant 0 : i32
    return %c0_i32, %c0_i32_0 : i32, i32
  }
  func.func @transform_3(%arg0: i32) -> (i32, i32) {
    %c0_i32 = arith.constant 0 : i32
    %c0_i32_0 = arith.constant 0 : i32
    %c0_i32_1 = arith.constant 0 : i32
    return %c0_i32, %c0_i32_0 : i32, i32
  }
  func.func @transform_4(%arg0: i32) -> (i32, i32) {
    %c0_i32 = arith.constant 0 : i32
    %c0_i32_0 = arith.constant 0 : i32
    return %arg0, %c0_i32 : i32, i32
  }
}

</mosaic_0001>

<llo_original>
// kernel: feed_forward_block.1
$region0: #{feed_forward_block.1}
  #allocation0 [shape = 'u32[]', space=smem, size = 0x4, offset = 0x4, fixed_abs, tag = 'smem constant byte address 0x4 - core index']
  #allocation1 [shape = 'u32[144,128]{1,0:T(1,128)}', space=vmem, size = 0x12000, scoped, tag = 'internal scratch']
  %s0 = inlined_call_operand.vmem [shape: f32[512,128], index: 0, kind: input, shape index: {}]
  %s1 = inlined_call_operand.vmem [shape: bf16[128,128], index: 1, kind: input, shape index: {}]
  %s2 = inlined_call_operand.vmem [shape: f32[1,128], index: 2, kind: input, shape index: {}]
  %s3 = inlined_call_operand.vmem [shape: bf16[128,128], index: 3, kind: input, shape index: {}]
  %s4 = inlined_call_operand.hbm [shape: f32[512,128], index: 4, kind: output, shape index: {}]
  %s5 = sld [smem:[#allocation0]]
  $region49: #{feed_forward_block.1} parent=0
    _
  %s7 = ssub.s32 1, %s5
  %s8 = scalar_select 0, %s7, %s5
  $region1: #{feed_forward_block.1} parent=0
    #allocation2 [shape = 'u8[262144]{0}', space=vmem, size = 0x40000, scoped, tag = 'output window, operand 0']
    #allocation3 [shape = 's32[2]{0}', space=sflag, size = 0x8, scoped, tag = 'scoped memory for feed_forward_block.1']
    %9 = vsyncpa [#allocation3], 0
    %s10 = scalar_lea.sflag [#allocation3], 1
    %11 = vsyncpa %s10, 0
    loop: start=0, step=1, limit=4
    $region2: #{feed_forward_block.1} parent=1 // loop_pre_header
      _
    $region3: #{feed_forward_block.1} parent=1 // loop_header
      %s13 = sphi 0, %s17
      %p14 = scmp.ge.s32.totalorder %s13, 4
      %s23 = sphi 0, %s25
      %s26 = sphi 0, %s23
      %s27 = sphi 0, %s26
      %s43 = sphi 0, %s27
      %s47 = sphi 0, %s47
      %s49 = sphi 0, %s47
      %s50 = sphi 0, %s49
      %s64 = sphi 0, %s50
      %s68 = sphi 0, %s68
      %s70 = sphi 0, %s68
      %s71 = sphi 0, %s70
      %s85 = sphi 0, %s71
      %s89 = sphi 0, %s89
      %s91 = sphi 0, %s89
      %s92 = sphi 0, %s91
      %s106 = sphi 0, %s92
      %s112 = sphi 0, %s114
      %s115 = sphi 0, %s112
      %s116 = sphi 0, %s115
      %s132 = sphi 0, %s116
    $region4: #{feed_forward_block.1} parent=1 // loop_header_branch
      %16 = sbr.rel (%p14) target = $region8
    $region5: #{feed_forward_block.1} parent=1 // loop_body
      %s18 = ssub.s32 %s13, 1
      %s19 = ssub.s32 %s13, 2
      %s20 = sadd.s32 %s13, 1
      %s21 = ssub.s32 %s13, %s20
      %p22 = scmp.eq.s32.totalorder %s21, 0
      %s24 = sadd.s32 %s23, 1
      %s25 = scalar_select %p22, %s23, %s24
      %p28 = pneg %p22
      %p29 = scmp.eq.s32.totalorder %s13, 1
      %p30 = por %p28, %p29
      %p31 = scmp.ne.s32.totalorder %s23, %s26
      %p32 = scmp.eq.s32.totalorder %s13, 0
      %p33 = por %p31, %p32
      %p34 = scmp.ne.s32.totalorder %s23, %s26
      %p35 = scmp.eq.s32.totalorder %s18, 1
      %p36 = por %p34, %p35
      %p37 = scmp.ne.s32.totalorder %s26, %s27
      %p38 = scmp.eq.s32.totalorder %s18, 0
      %p39 = por %p37, %p38
      %p40 = scmp.ne.s32.totalorder %s26, %s27
      %p41 = scmp.eq.s32.totalorder %s19, 1
      %p42 = por %p40, %p41
      %p44 = scmp.ne.s32.totalorder %s27, %s43
      %p45 = scmp.eq.s32.totalorder %s19, 0
      %p46 = por %p44, %p45
      %s48 = sadd.s32 %s47, 1
      %p51 = scmp.eq.s32.totalorder %s13, 1
      %p52 = scmp.ne.s32.totalorder %s47, %s49
      %p53 = scmp.eq.s32.totalorder %s13, 0
      %p54 = por %p52, %p53
      %p55 = scmp.ne.s32.totalorder %s47, %s49
      %p56 = scmp.eq.s32.totalorder %s18, 1
      %p57 = por %p55, %p56
      %p58 = scmp.ne.s32.totalorder %s49, %s50
      %p59 = scmp.eq.s32.totalorder %s18, 0
      %p60 = por %p58, %p59
      %p61 = scmp.ne.s32.totalorder %s49, %s50
      %p62 = scmp.eq.s32.totalorder %s19, 1
      %p63 = por %p61, %p62
      %p65 = scmp.ne.s32.totalorder %s50, %s64
      %p66 = scmp.eq.s32.totalorder %s19, 0
      %p67 = por %p65, %p66
      %s69 = sadd.s32 %s68, 1
      %p72 = scmp.eq.s32.totalorder %s13, 1
      %p73 = scmp.ne.s32.totalorder %s68, %s70
      %p74 = scmp.eq.s32.totalorder %s13, 0
      %p75 = por %p73, %p74
      %p76 = scmp.ne.s32.totalorder %s68, %s70
      %p77 = scmp.eq.s32.totalorder %s18, 1
      %p78 = por %p76, %p77
      %p79 = scmp.ne.s32.totalorder %s70, %s71
      %p80 = scmp.eq.s32.totalorder %s18, 0
      %p81 = por %p79, %p80
      %p82 = scmp.ne.s32.totalorder %s70, %s71
      %p83 = scmp.eq.s32.totalorder %s19, 1
      %p84 = por %p82, %p83
      %p86 = scmp.ne.s32.totalorder %s71, %s85
      %p87 = scmp.eq.s32.totalorder %s19, 0
      %p88 = por %p86, %p87
      %s90 = sadd.s32 %s89, 1
      %p93 = scmp.eq.s32.totalorder %s13, 1
      %p94 = scmp.ne.s32.totalorder %s89, %s91
      %p95 = scmp.eq.s32.totalorder %s13, 0
      %p96 = por %p94, %p95
      %p97 = scmp.ne.s32.totalorder %s89, %s91
      %p98 = scmp.eq.s32.totalorder %s18, 1
      %p99 = por %p97, %p98
      %p100 = scmp.ne.s32.totalorder %s91, %s92
      %p101 = scmp.eq.s32.totalorder %s18, 0
      %p102 = por %p100, %p101
      %p103 = scmp.ne.s32.totalorder %s91, %s92
      %p104 = scmp.eq.s32.totalorder %s19, 1
      %p105 = por %p103, %p104
      %p107 = scmp.ne.s32.totalorder %s92, %s106
      %p108 = scmp.eq.s32.totalorder %s19, 0
      %p109 = por %p107, %p108
      %s110 = ssub.s32 %s13, %s20
      %p111 = scmp.eq.s32.totalorder %s110, 0
      %s113 = sadd.s32 %s112, 1
      %s114 = scalar_select %p111, %s112, %s113
      %p117 = pneg %p111
      %p118 = scmp.eq.s32.totalorder %s13, 1
      %p119 = por %p117, %p118
      %p120 = scmp.ne.s32.totalorder %s112, %s115
      %p121 = scmp.eq.s32.totalorder %s13, 0
      %p122 = por %p120, %p121
      %p123 = scmp.ne.s32.totalorder %s112, %s115
      %p124 = scmp.eq.s32.totalorder %s18, 1
      %p125 = por %p123, %p124
      %p126 = scmp.ne.s32.totalorder %s115, %s116
      %p127 = scmp.eq.s32.totalorder %s18, 0
      %p128 = por %p126, %p127
      %p129 = scmp.ne.s32.totalorder %s115, %s116
      %p130 = scmp.eq.s32.totalorder %s19, 1
      %p131 = por %p129, %p130
      %p133 = scmp.ne.s32.totalorder %s116, %s132
      %p134 = scmp.eq.s32.totalorder %s19, 0
      %p135 = por %p133, %p134
      %p136 = scmp.le.s32.totalorder 1, %s13
      %p137 = scmp.lt.s32.totalorder %s13, 3
      %p138 = pnand %p136, %p137
      %p139 = pneg %p138
      // Predicated region
      $region9: #{feed_forward_block.1} parent=5 // pred_check
        _
      $region10: #{feed_forward_block.1} parent=5 // pred_check_branch
        %141 = sbr.rel (%p138) target = $region12
      $region11: #{feed_forward_block.1} parent=5 // pred_region
        %s142 = ssub.s32 %s13, 1
        // Predicated region
        $region13: #{feed_forward_block.1} parent=11 // pred_check
          %p143 = pneg %p60
        $region14: #{feed_forward_block.1} parent=11 // pred_check_branch
          %145 = sbr.rel (%p143) target = $region16
        $region15: #{feed_forward_block.1} parent=11 // pred_region
          _
        $region16: #{feed_forward_block.1} parent=11 // pred_fallthru
          _
        // Predicated region
        $region17: #{feed_forward_block.1} parent=11 // pred_check
          %p146 = pneg %p81
        $region18: #{feed_forward_block.1} parent=11 // pred_check_branch
          %148 = sbr.rel (%p146) target = $region20
        $region19: #{feed_forward_block.1} parent=11 // pred_region
          _
        $region20: #{feed_forward_block.1} parent=11 // pred_fallthru
          _
        // Predicated region
        $region21: #{feed_forward_block.1} parent=11 // pred_check
          %p149 = pneg %p102
        $region22: #{feed_forward_block.1} parent=11 // pred_check_branch
          %151 = sbr.rel (%p149) target = $region24
        $region23: #{feed_forward_block.1} parent=11 // pred_region
          _
        $region24: #{feed_forward_block.1} parent=11 // pred_fallthru
          _
      $region12: #{feed_forward_block.1} parent=5 // pred_fallthru
        _
      %p152 = scmp.lt.s32.totalorder %s13, 2
      // Predicated region
      $region25: #{feed_forward_block.1} parent=5 // pred_check
        %p153 = pneg %p152
      $region26: #{feed_forward_block.1} parent=5 // pred_check_branch
        %155 = sbr.rel (%p153) target = $region28
      $region27: #{feed_forward_block.1} parent=5 // pred_region
        // Predicated region
        $region29: #{feed_forward_block.1} parent=27 // pred_check
          %p156 = pneg %p33
        $region30: #{feed_forward_block.1} parent=27 // pred_check_branch
          %158 = sbr.rel (%p156) target = $region32
        $region31: #{feed_forward_block.1} parent=27 // pred_region
          %s159 = smul.u32 32, %s13
          %p160 = scmp.lt.s32.totalorder %s159, 63
          %s161 = scalar_select %p160, %s159, 63
          %s162 = smul.addr %s161, 8
          %s163 = scalar_lea.vmem %s0, %s162
          %s164 = smul.u32 32, %s13
        $region32: #{feed_forward_block.1} parent=27 // pred_fallthru
          _
      $region28: #{feed_forward_block.1} parent=5 // pred_fallthru
        _
      %p165 = scmp.le.s32.totalorder 1, %s13
      %p166 = scmp.lt.s32.totalorder %s13, 3
      %p167 = pnand %p165, %p166
      %p168 = pneg %p167
      // Predicated region
      $region33: #{feed_forward_block.1} parent=5 // pred_check
        _
      $region34: #{feed_forward_block.1} parent=5 // pred_check_branch
        %170 = sbr.rel (%p167) target = $region36
      $region35: #{feed_forward_block.1} parent=5 // pred_region
        %s171 = ssub.s32 %s13, 1
        %s172 = smul.u32 32, %s18
        %p173 = scmp.lt.s32.totalorder %s172, 63
        %s174 = scalar_select %p173, %s172, 63
        %s175 = smul.addr %s174, 8
        %s176 = scalar_lea.vmem %s0, %s175
        %p177 = pneg %p39
        %p178 = pneg %p36
        %p179 = pneg %p60
        %p180 = pneg %p57
        %p181 = pneg %p81
        %p182 = pneg %p78
        %p183 = pneg %p102
        %p184 = pneg %p99
        %p185 = pneg %p128
        %p186 = pneg %p125
        %s187 = sand.u32 %s115, 1
        %s188 = scalar_lea.sflag [#allocation3], %s187
        %s189 = sand.u32 %s115, 1
        %s190 = smul.addr %s189, 256
        %s191 = scalar_lea.vmem [#allocation2], %s190
        %s192 = smul.u32 32, %s18
        %p193 = scmp.lt.s32.totalorder %s192, 63
        %s194 = scalar_select %p193, %s192, 63
        %s195 = smul.addr %s194, 8
        %s196 = scalar_lea.vmem %s0, %s195
        %s197 = smul.u32 32, %s18
        %s198 = smul.u32 32, %s18
        %v200 = vld [vmem:[%s196] sm:$0xff]
        %v201 = vld [vmem:[%s196 + $0x8] sm:$0xff]
        %v202 = vld [vmem:[%s196 + $0x10] sm:$0xff]
        %v203 = vld [vmem:[%s196 + $0x18] sm:$0xff]
        %v204 = vld [vmem:[%s196 + $0x20] sm:$0xff]
        %v205 = vld [vmem:[%s196 + $0x28] sm:$0xff]
        %v206 = vld [vmem:[%s196 + $0x30] sm:$0xff]
        %v207 = vld [vmem:[%s196 + $0x38] sm:$0xff]
        %v208 = vld [vmem:[%s196 + $0x40] sm:$0xff]
        %v209 = vld [vmem:[%s196 + $0x48] sm:$0xff]
        %v210 = vld [vmem:[%s196 + $0x50] sm:$0xff]
        %v211 = vld [vmem:[%s196 + $0x58] sm:$0xff]
        %v212 = vld [vmem:[%s196 + $0x60] sm:$0xff]
        %v213 = vld [vmem:[%s196 + $0x68] sm:$0xff]
        %v214 = vld [vmem:[%s196 + $0x70] sm:$0xff]
        %v215 = vld [vmem:[%s196 + $0x78] sm:$0xff]
        %v216 = vld [vmem:[%s196 + $0x80] sm:$0xff]
        %v217 = vld [vmem:[%s196 + $0x88] sm:$0xff]
        %v218 = vld [vmem:[%s196 + $0x90] sm:$0xff]
        %v219 = vld [vmem:[%s196 + $0x98] sm:$0xff]
        %v220 = vld [vmem:[%s196 + $0xa0] sm:$0xff]
        %v221 = vld [vmem:[%s196 + $0xa8] sm:$0xff]
        %v222 = vld [vmem:[%s196 + $0xb0] sm:$0xff]
        %v223 = vld [vmem:[%s196 + $0xb8] sm:$0xff]
        %v224 = vld [vmem:[%s196 + $0xc0] sm:$0xff]
        %v225 = vld [vmem:[%s196 + $0xc8] sm:$0xff]
        %v226 = vld [vmem:[%s196 + $0xd0] sm:$0xff]
        %v227 = vld [vmem:[%s196 + $0xd8] sm:$0xff]
        %v228 = vld [vmem:[%s196 + $0xe0] sm:$0xff]
        %v229 = vld [vmem:[%s196 + $0xe8] sm:$0xff]
        %v230 = vld [vmem:[%s196 + $0xf0] sm:$0xff]
        %v231 = vld [vmem:[%s196 + $0xf8] sm:$0xff]
        %v232 = vpack.c.bf16 %v201, %v200
        %v233 = vpack.c.bf16 %v203, %v202
        %v234 = vpack.c.bf16 %v205, %v204
        %v235 = vpack.c.bf16 %v207, %v206
        %v236 = vpack.c.bf16 %v209, %v208
        %v237 = vpack.c.bf16 %v211, %v210
        %v238 = vpack.c.bf16 %v213, %v212
        %v239 = vpack.c.bf16 %v215, %v214
        %v240 = vpack.c.bf16 %v217, %v216
        %v241 = vpack.c.bf16 %v219, %v218
        %v242 = vpack.c.bf16 %v221, %v220
        %v243 = vpack.c.bf16 %v223, %v222
        %v244 = vpack.c.bf16 %v225, %v224
        %v245 = vpack.c.bf16 %v227, %v226
        %v246 = vpack.c.bf16 %v229, %v228
        %v247 = vpack.c.bf16 %v231, %v230
        %v248 = vld [vmem:[%s1] sm:$0xf]
        %v249 = vld [vmem:[%s1 + $0x4] sm:$0xf]
        %v250 = vld [vmem:[%s1 + $0x8] sm:$0xf]
        %v251 = vld [vmem:[%s1 + $0xc] sm:$0xf]
        %v252 = vld [vmem:[%s1 + $0x10] sm:$0xf]
        %v253 = vld [vmem:[%s1 + $0x14] sm:$0xf]
        %v254 = vld [vmem:[%s1 + $0x18] sm:$0xf]
        %v255 = vld [vmem:[%s1 + $0x1c] sm:$0xf]
        %v256 = vld [vmem:[%s1 + $0x20] sm:$0xf]
        %v257 = vld [vmem:[%s1 + $0x24] sm:$0xf]
        %v258 = vld [vmem:[%s1 + $0x28] sm:$0xf]
        %v259 = vld [vmem:[%s1 + $0x2c] sm:$0xf]
        %v260 = vld [vmem:[%s1 + $0x30] sm:$0xf]
        %v261 = vld [vmem:[%s1 + $0x34] sm:$0xf]
        %v262 = vld [vmem:[%s1 + $0x38] sm:$0xf]
        %v263 = vld [vmem:[%s1 + $0x3c] sm:$0xf]
        %v264 = vld [vmem:[%s2] sm:$0x1]
        %v266 = vlaneseq
        %v267 = vshrl.u32 %v266, 7
        %v268 = vsub.s32 0, %v267
        %v269 = vrot.slane %v264, %v268
        %v287 = vunpack.c.l.b16 %v248
        %v288 = vunpack.c.l.b16 %v249
        %v289 = vunpack.c.l.b16 %v250
        %v290 = vunpack.c.l.b16 %v251
        %v291 = vunpack.c.l.b16 %v252
        %v292 = vunpack.c.l.b16 %v253
        %v293 = vunpack.c.l.b16 %v254
        %v294 = vunpack.c.l.b16 %v255
        %v295 = vunpack.c.l.b16 %v256
        %v296 = vunpack.c.l.b16 %v257
        %v297 = vunpack.c.l.b16 %v258
        %v298 = vunpack.c.l.b16 %v259
        %v299 = vunpack.c.l.b16 %v260
        %v300 = vunpack.c.l.b16 %v261
        %v301 = vunpack.c.l.b16 %v262
        %v302 = vunpack.c.l.b16 %v263
        %v303 = vpack.c.b16 %v288, %v287
        %v304 = vpack.c.b16 %v290, %v289
        %v305 = vpack.c.b16 %v292, %v291
        %v306 = vpack.c.b16 %v294, %v293
        %v307 = vpack.c.b16 %v296, %v295
        %v308 = vpack.c.b16 %v298, %v297
        %v309 = vpack.c.b16 %v300, %v299
        %v310 = vpack.c.b16 %v302, %v301
        %319 = vmatprep.subr.bf16.mxu0 0
        %320 = vmatpush1.bf16.msra.mxu0 %v303
        %321 = vmatprep.subr.bf16.mxu0 0
        %322 = vmatpush1.bf16.msra.mxu0 %v304
        %323 = vmatprep.subr.bf16.mxu0 0
        %324 = vmatpush1.bf16.msra.mxu0 %v305
        %325 = vmatprep.subr.bf16.mxu0 0
        %326 = vmatpush1.bf16.msra.mxu0 %v306
        %327 = vmatprep.subr.bf16.mxu0 0
        %328 = vmatpush1.bf16.msra.mxu0 %v307
        %329 = vmatprep.subr.bf16.mxu0 0
        %330 = vmatpush1.bf16.msra.mxu0 %v308
        %331 = vmatprep.subr.bf16.mxu0 0
        %332 = vmatpush1.bf16.msra.mxu0 %v309
        %333 = vmatprep.subr.bf16.mxu0 0
        %334 = vmatpush1.bf16.msra.mxu0 %v310
        %335 = vmatprep.subr.bf16.mxu0 0
        %336 = vmatpush1.bf16.msra.mxu0 0
        %337 = vmatprep.subr.bf16.mxu0 0
        %338 = vmatpush1.bf16.msra.mxu0 0
        %339 = vmatprep.subr.bf16.mxu0 0
        %340 = vmatpush1.bf16.msra.mxu0 0
        %341 = vmatprep.subr.bf16.mxu0 0
        %342 = vmatpush1.bf16.msra.mxu0 0
        %343 = vmatprep.subr.bf16.mxu0 0
        %344 = vmatpush1.bf16.msra.mxu0 0
        %345 = vmatprep.subr.bf16.mxu0 0
        %346 = vmatpush1.bf16.msra.mxu0 0
        %347 = vmatprep.subr.bf16.mxu0 0
        %348 = vmatpush1.bf16.msra.mxu0 0
        %349 = vmatprep.subr.bf16.mxu0 0
        %350 = vmatpush1.bf16.msra.mxu0 0
        %351 = vmatprep.mubr.bf16.mxu0 0
        %352 = vmatmul.mubr.bf16.gmra.mrb[0].mxu0 %v232
        %v353 = vpop.f32.mrb[0].mxu0
        %v354 = vadd.f32 %v269, %v353
        %v355 = vpop.f32.mrb[0].mxu0
        %v356 = vpop.f32.mrb[0].mxu0
        %v357 = vadd.f32 %v269, %v356
        %v358 = vpop.f32.mrb[0].mxu0
        %359 = vmatprep.mubr.bf16.mxu0 0
        %360 = vmatmul.mubr.bf16.gmra.mrb[0].mxu0 %v233
        %v361 = vpop.f32.mrb[0].mxu0
        %v362 = vadd.f32 %v269, %v361
        %v363 = vpop.f32.mrb[0].mxu0
        %v364 = vpop.f32.mrb[0].mxu0
        %v365 = vadd.f32 %v269, %v364
        %v366 = vpop.f32.mrb[0].mxu0
        %367 = vmatprep.mubr.bf16.mxu0 0
        %368 = vmatmul.mubr.bf16.gmra.mrb[0].mxu0 %v234
        %v369 = vpop.f32.mrb[0].mxu0
        %v370 = vadd.f32 %v269, %v369
        %v371 = vpop.f32.mrb[0].mxu0
        %v372 = vpop.f32.mrb[0].mxu0
        %v373 = vadd.f32 %v269, %v372
        %v374 = vpop.f32.mrb[0].mxu0
        %375 = vmatprep.mubr.bf16.mxu0 0
        %376 = vmatmul.mubr.bf16.gmra.mrb[0].mxu0 %v235
        %v377 = vpop.f32.mrb[0].mxu0
        %v378 = vadd.f32 %v269, %v377
        %v379 = vpop.f32.mrb[0].mxu0
        %v380 = vpop.f32.mrb[0].mxu0
        %v381 = vadd.f32 %v269, %v380
        %v382 = vpop.f32.mrb[0].mxu0
        %383 = vmatprep.mubr.bf16.mxu0 0
        %384 = vmatmul.mubr.bf16.gmra.mrb[0].mxu0 %v236
        %v385 = vpop.f32.mrb[0].mxu0
        %v386 = vadd.f32 %v269, %v385
        %v387 = vpop.f32.mrb[0].mxu0
        %v388 = vpop.f32.mrb[0].mxu0
        %v389 = vadd.f32 %v269, %v388
        %v390 = vpop.f32.mrb[0].mxu0
        %391 = vmatprep.mubr.bf16.mxu0 0
        %392 = vmatmul.mubr.bf16.gmra.mrb[0].mxu0 %v237
        %v393 = vpop.f32.mrb[0].mxu0
        %v394 = vadd.f32 %v269, %v393
        %v395 = vpop.f32.mrb[0].mxu0
        %v396 = vpop.f32.mrb[0].mxu0
        %v397 = vadd.f32 %v269, %v396
        %v398 = vpop.f32.mrb[0].mxu0
        %399 = vmatprep.mubr.bf16.mxu0 0
        %400 = vmatmul.mubr.bf16.gmra.mrb[0].mxu0 %v238
        %v401 = vpop.f32.mrb[0].mxu0
        %v402 = vadd.f32 %v269, %v401
        %v403 = vpop.f32.mrb[0].mxu0
        %v404 = vpop.f32.mrb[0].mxu0
        %v405 = vadd.f32 %v269, %v404
        %v406 = vpop.f32.mrb[0].mxu0
        %407 = vmatprep.mubr.bf16.mxu0 0
        %408 = vmatmul.mubr.bf16.gmra.mrb[0].mxu0 %v239
        %v409 = vpop.f32.mrb[0].mxu0
        %v410 = vadd.f32 %v269, %v409
        %v411 = vpop.f32.mrb[0].mxu0
        %v412 = vpop.f32.mrb[0].mxu0
        %v413 = vadd.f32 %v269, %v412
        %v414 = vpop.f32.mrb[0].mxu0
        %415 = vmatprep.mubr.bf16.mxu0 0
        %416 = vmatmul.mubr.bf16.gmra.mrb[0].mxu0 %v240
        %v417 = vpop.f32.mrb[0].mxu0
        %v418 = vadd.f32 %v269, %v417
        %v419 = vpop.f32.mrb[0].mxu0
        %v420 = vpop.f32.mrb[0].mxu0
        %v421 = vadd.f32 %v269, %v420
        %v422 = vpop.f32.mrb[0].mxu0
        %423 = vmatprep.mubr.bf16.mxu0 0
        %424 = vmatmul.mubr.bf16.gmra.mrb[0].mxu0 %v241
        %v425 = vpop.f32.mrb[0].mxu0
        %v426 = vadd.f32 %v269, %v425
        %v427 = vpop.f32.mrb[0].mxu0
        %v428 = vpop.f32.mrb[0].mxu0
        %v429 = vadd.f32 %v269, %v428
        %v430 = vpop.f32.mrb[0].mxu0
        %431 = vmatprep.mubr.bf16.mxu0 0
        %432 = vmatmul.mubr.bf16.gmra.mrb[0].mxu0 %v242
        %v433 = vpop.f32.mrb[0].mxu0
        %v434 = vadd.f32 %v269, %v433
        %v435 = vpop.f32.mrb[0].mxu0
        %v436 = vpop.f32.mrb[0].mxu0
        %v437 = vadd.f32 %v269, %v436
        %v438 = vpop.f32.mrb[0].mxu0
        %439 = vmatprep.mubr.bf16.mxu0 0
        %440 = vmatmul.mubr.bf16.gmra.mrb[0].mxu0 %v243
        %v441 = vpop.f32.mrb[0].mxu0
        %v442 = vadd.f32 %v269, %v441
        %v443 = vpop.f32.mrb[0].mxu0
        %v444 = vpop.f32.mrb[0].mxu0
        %v445 = vadd.f32 %v269, %v444
        %v446 = vpop.f32.mrb[0].mxu0
        %447 = vmatprep.mubr.bf16.mxu0 0
        %448 = vmatmul.mubr.bf16.gmra.mrb[0].mxu0 %v244
        %v449 = vpop.f32.mrb[0].mxu0
        %v450 = vadd.f32 %v269, %v449
        %v451 = vpop.f32.mrb[0].mxu0
        %v452 = vpop.f32.mrb[0].mxu0
        %v453 = vadd.f32 %v269, %v452
        %v454 = vpop.f32.mrb[0].mxu0
        %455 = vmatprep.mubr.bf16.mxu0 0
        %456 = vmatmul.mubr.bf16.gmra.mrb[0].mxu0 %v245
        %v457 = vpop.f32.mrb[0].mxu0
        %v458 = vadd.f32 %v269, %v457
        %v459 = vpop.f32.mrb[0].mxu0
        %v460 = vpop.f32.mrb[0].mxu0
        %v461 = vadd.f32 %v269, %v460
        %v462 = vpop.f32.mrb[0].mxu0
        %463 = vmatprep.mubr.bf16.mxu0 0
        %464 = vmatmul.mubr.bf16.gmra.mrb[0].mxu0 %v246
        %v465 = vpop.f32.mrb[0].mxu0
        %v466 = vadd.f32 %v269, %v465
        %v467 = vpop.f32.mrb[0].mxu0
        %v468 = vpop.f32.mrb[0].mxu0
        %v469 = vadd.f32 %v269, %v468
        %v470 = vpop.f32.mrb[0].mxu0
        %471 = vmatprep.mubr.bf16.mxu0 0
        %472 = vmatmul.mubr.bf16.gmra.mrb[0].mxu0 %v247
        %v473 = vpop.f32.mrb[0].mxu0
        %v474 = vadd.f32 %v269, %v473
        %v475 = vpop.f32.mrb[0].mxu0
        %v476 = vpop.f32.mrb[0].mxu0
        %v477 = vadd.f32 %v269, %v476
        %v478 = vpop.f32.mrb[0].mxu0
        %479 = vdwg.mxu0
        %v480 = vxor.u32 %v354, 2147483648
        %v481 = vxor.u32 %v357, 2147483648
        %v482 = vxor.u32 %v362, 2147483648
        %v483 = vxor.u32 %v365, 2147483648
        %v484 = vxor.u32 %v370, 2147483648
        %v485 = vxor.u32 %v373, 2147483648
        %v486 = vxor.u32 %v378, 2147483648
        %v487 = vxor.u32 %v381, 2147483648
        %v488 = vxor.u32 %v386, 2147483648
        %v489 = vxor.u32 %v389, 2147483648
        %v490 = vxor.u32 %v394, 2147483648
        %v491 = vxor.u32 %v397, 2147483648
        %v492 = vxor.u32 %v402, 2147483648
        %v493 = vxor.u32 %v405, 2147483648
        %v494 = vxor.u32 %v410, 2147483648
        %v495 = vxor.u32 %v413, 2147483648
        %v496 = vxor.u32 %v418, 2147483648
        %v497 = vxor.u32 %v421, 2147483648
        %v498 = vxor.u32 %v426, 2147483648
        %v499 = vxor.u32 %v429, 2147483648
        %v500 = vxor.u32 %v434, 2147483648
        %v501 = vxor.u32 %v437, 2147483648
        %v502 = vxor.u32 %v442, 2147483648
        %v503 = vxor.u32 %v445, 2147483648
        %v504 = vxor.u32 %v450, 2147483648
        %v505 = vxor.u32 %v453, 2147483648
        %v506 = vxor.u32 %v458, 2147483648
        %v507 = vxor.u32 %v461, 2147483648
        %v508 = vxor.u32 %v466, 2147483648
        %v509 = vxor.u32 %v469, 2147483648
        %v510 = vxor.u32 %v474, 2147483648
        %v511 = vxor.u32 %v477, 2147483648
        %v512 = vmul.f32 %v480, 1.442695
        %v513 = vpow.pop %v512
        %v514 = vmul.f32 %v481, 1.442695
        %v515 = vpow.pop %v514
        %v516 = vmul.f32 %v482, 1.442695
        %v517 = vpow.pop %v516
        %v518 = vmul.f32 %v483, 1.442695
        %v519 = vpow.pop %v518
        %v520 = vmul.f32 %v484, 1.442695
        %v521 = vpow.pop %v520
        %v522 = vmul.f32 %v485, 1.442695
        %v523 = vpow.pop %v522
        %v524 = vmul.f32 %v486, 1.442695
        %v525 = vpow.pop %v524
        %v526 = vmul.f32 %v487, 1.442695
        %v527 = vpow.pop %v526
        %v528 = vmul.f32 %v488, 1.442695
        %v529 = vpow.pop %v528
        %v530 = vmul.f32 %v489, 1.442695
        %v531 = vpow.pop %v530
        %v532 = vmul.f32 %v490, 1.442695
        %v533 = vpow.pop %v532
        %v534 = vmul.f32 %v491, 1.442695
        %v535 = vpow.pop %v534
        %v536 = vmul.f32 %v492, 1.442695
        %v537 = vpow.pop %v536
        %v538 = vmul.f32 %v493, 1.442695
        %v539 = vpow.pop %v538
        %v540 = vmul.f32 %v494, 1.442695
        %v541 = vpow.pop %v540
        %v542 = vmul.f32 %v495, 1.442695
        %v543 = vpow.pop %v542
        %v544 = vmul.f32 %v496, 1.442695
        %v545 = vpow.pop %v544
        %v546 = vmul.f32 %v497, 1.442695
        %v547 = vpow.pop %v546
        %v548 = vmul.f32 %v498, 1.442695
        %v549 = vpow.pop %v548
        %v550 = vmul.f32 %v499, 1.442695
        %v551 = vpow.pop %v550
        %v552 = vmul.f32 %v500, 1.442695
        %v553 = vpow.pop %v552
        %v554 = vmul.f32 %v501, 1.442695
        %v555 = vpow.pop %v554
        %v556 = vmul.f32 %v502, 1.442695
        %v557 = vpow.pop %v556
        %v558 = vmul.f32 %v503, 1.442695
        %v559 = vpow.pop %v558
        %v560 = vmul.f32 %v504, 1.442695
        %v561 = vpow.pop %v560
        %v562 = vmul.f32 %v505, 1.442695
        %v563 = vpow.pop %v562
        %v564 = vmul.f32 %v506, 1.442695
        %v565 = vpow.pop %v564
        %v566 = vmul.f32 %v507, 1.442695
        %v567 = vpow.pop %v566
        %v568 = vmul.f32 %v508, 1.442695
        %v569 = vpow.pop %v568
        %v570 = vmul.f32 %v509, 1.442695
        %v571 = vpow.pop %v570
        %v572 = vmul.f32 %v510, 1.442695
        %v573 = vpow.pop %v572
        %v574 = vmul.f32 %v511, 1.442695
        %v575 = vpow.pop %v574
        %v576 = vadd.f32 %v513, 1.0
        %v577 = vadd.f32 %v515, 1.0
        %v578 = vadd.f32 %v517, 1.0
        %v579 = vadd.f32 %v519, 1.0
        %v580 = vadd.f32 %v521, 1.0
        %v581 = vadd.f32 %v523, 1.0
        %v582 = vadd.f32 %v525, 1.0
        %v583 = vadd.f32 %v527, 1.0
        %v584 = vadd.f32 %v529, 1.0
        %v585 = vadd.f32 %v531, 1.0
        %v586 = vadd.f32 %v533, 1.0
        %v587 = vadd.f32 %v535, 1.0
        %v588 = vadd.f32 %v537, 1.0
        %v589 = vadd.f32 %v539, 1.0
        %v590 = vadd.f32 %v541, 1.0
        %v591 = vadd.f32 %v543, 1.0
        %v592 = vadd.f32 %v545, 1.0
        %v593 = vadd.f32 %v547, 1.0
        %v594 = vadd.f32 %v549, 1.0
        %v595 = vadd.f32 %v551, 1.0
        %v596 = vadd.f32 %v553, 1.0
        %v597 = vadd.f32 %v555, 1.0
        %v598 = vadd.f32 %v557, 1.0
        %v599 = vadd.f32 %v559, 1.0
        %v600 = vadd.f32 %v561, 1.0
        %v601 = vadd.f32 %v563, 1.0
        %v602 = vadd.f32 %v565, 1.0
        %v603 = vadd.f32 %v567, 1.0
        %v604 = vadd.f32 %v569, 1.0
        %v605 = vadd.f32 %v571, 1.0
        %v606 = vadd.f32 %v573, 1.0
        %v607 = vadd.f32 %v575, 1.0
        %v608 = vrcp.pop %v576
        %v609 = vmul.f32 1.0, %v608
        %v610 = vrcp.pop %v577
        %v611 = vmul.f32 1.0, %v610
        %v612 = vrcp.pop %v578
        %v613 = vmul.f32 1.0, %v612
        %v614 = vrcp.pop %v579
        %v615 = vmul.f32 1.0, %v614
        %v616 = vrcp.pop %v580
        %v617 = vmul.f32 1.0, %v616
        %v618 = vrcp.pop %v581
        %v619 = vmul.f32 1.0, %v618
        %v620 = vrcp.pop %v582
        %v621 = vmul.f32 1.0, %v620
        %v622 = vrcp.pop %v583
        %v623 = vmul.f32 1.0, %v622
        %v624 = vrcp.pop %v584
        %v625 = vmul.f32 1.0, %v624
        %v626 = vrcp.pop %v585
        %v627 = vmul.f32 1.0, %v626
        %v628 = vrcp.pop %v586
        %v629 = vmul.f32 1.0, %v628
        %v630 = vrcp.pop %v587
        %v631 = vmul.f32 1.0, %v630
        %v632 = vrcp.pop %v588
        %v633 = vmul.f32 1.0, %v632
        %v634 = vrcp.pop %v589
        %v635 = vmul.f32 1.0, %v634
        %v636 = vrcp.pop %v590
        %v637 = vmul.f32 1.0, %v636
        %v638 = vrcp.pop %v591
        %v639 = vmul.f32 1.0, %v638
        %v640 = vrcp.pop %v592
        %v641 = vmul.f32 1.0, %v640
        %v642 = vrcp.pop %v593
        %v643 = vmul.f32 1.0, %v642
        %v644 = vrcp.pop %v594
        %v645 = vmul.f32 1.0, %v644
        %v646 = vrcp.pop %v595
        %v647 = vmul.f32 1.0, %v646
        %v648 = vrcp.pop %v596
        %v649 = vmul.f32 1.0, %v648
        %v650 = vrcp.pop %v597
        %v651 = vmul.f32 1.0, %v650
        %v652 = vrcp.pop %v598
        %v653 = vmul.f32 1.0, %v652
        %v654 = vrcp.pop %v599
        %v655 = vmul.f32 1.0, %v654
        %v656 = vrcp.pop %v600
        %v657 = vmul.f32 1.0, %v656
        %v658 = vrcp.pop %v601
        %v659 = vmul.f32 1.0, %v658
        %v660 = vrcp.pop %v602
        %v661 = vmul.f32 1.0, %v660
        %v662 = vrcp.pop %v603
        %v663 = vmul.f32 1.0, %v662
        %v664 = vrcp.pop %v604
        %v665 = vmul.f32 1.0, %v664
        %v666 = vrcp.pop %v605
        %v667 = vmul.f32 1.0, %v666
        %v668 = vrcp.pop %v606
        %v669 = vmul.f32 1.0, %v668
        %v670 = vrcp.pop %v607
        %v671 = vmul.f32 1.0, %v670
        %v672 = vmul.f32 %v354, %v609
        %v673 = vmul.f32 %v357, %v611
        %v674 = vmul.f32 %v362, %v613
        %v675 = vmul.f32 %v365, %v615
        %v676 = vmul.f32 %v370, %v617
        %v677 = vmul.f32 %v373, %v619
        %v678 = vmul.f32 %v378, %v621
        %v679 = vmul.f32 %v381, %v623
        %v680 = vmul.f32 %v386, %v625
        %v681 = vmul.f32 %v389, %v627
        %v682 = vmul.f32 %v394, %v629
        %v683 = vmul.f32 %v397, %v631
        %v684 = vmul.f32 %v402, %v633
        %v685 = vmul.f32 %v405, %v635
        %v686 = vmul.f32 %v410, %v637
        %v687 = vmul.f32 %v413, %v639
        %v688 = vmul.f32 %v418, %v641
        %v689 = vmul.f32 %v421, %v643
        %v690 = vmul.f32 %v426, %v645
        %v691 = vmul.f32 %v429, %v647
        %v692 = vmul.f32 %v434, %v649
        %v693 = vmul.f32 %v437, %v651
        %v694 = vmul.f32 %v442, %v653
        %v695 = vmul.f32 %v445, %v655
        %v696 = vmul.f32 %v450, %v657
        %v697 = vmul.f32 %v453, %v659
        %v698 = vmul.f32 %v458, %v661
        %v699 = vmul.f32 %v461, %v663
        %v700 = vmul.f32 %v466, %v665
        %v701 = vmul.f32 %v469, %v667
        %v702 = vmul.f32 %v474, %v669
        %v703 = vmul.f32 %v477, %v671
        %v704 = vpack.c.bf16 %v673, %v672
        %v705 = vpack.c.bf16 %v675, %v674
        %v706 = vpack.c.bf16 %v677, %v676
        %v707 = vpack.c.bf16 %v679, %v678
        %v708 = vpack.c.bf16 %v681, %v680
        %v709 = vpack.c.bf16 %v683, %v682
        %v710 = vpack.c.bf16 %v685, %v684
        %v711 = vpack.c.bf16 %v687, %v686
        %v712 = vpack.c.bf16 %v689, %v688
        %v713 = vpack.c.bf16 %v691, %v690
        %v714 = vpack.c.bf16 %v693, %v692
        %v715 = vpack.c.bf16 %v695, %v694
        %v716 = vpack.c.bf16 %v697, %v696
        %v717 = vpack.c.bf16 %v699, %v698
        %v718 = vpack.c.bf16 %v701, %v700
        %v719 = vpack.c.bf16 %v703, %v702
        %v720 = vld [vmem:[%s3] sm:$0xf]
        %v721 = vld [vmem:[%s3 + $0x4] sm:$0xf]
        %v722 = vld [vmem:[%s3 + $0x8] sm:$0xf]
        %v723 = vld [vmem:[%s3 + $0xc] sm:$0xf]
        %v724 = vld [vmem:[%s3 + $0x10] sm:$0xf]
        %v725 = vld [vmem:[%s3 + $0x14] sm:$0xf]
        %v726 = vld [vmem:[%s3 + $0x18] sm:$0xf]
        %v727 = vld [vmem:[%s3 + $0x1c] sm:$0xf]
        %v728 = vld [vmem:[%s3 + $0x20] sm:$0xf]
        %v729 = vld [vmem:[%s3 + $0x24] sm:$0xf]
        %v730 = vld [vmem:[%s3 + $0x28] sm:$0xf]
        %v731 = vld [vmem:[%s3 + $0x2c] sm:$0xf]
        %v732 = vld [vmem:[%s3 + $0x30] sm:$0xf]
        %v733 = vld [vmem:[%s3 + $0x34] sm:$0xf]
        %v734 = vld [vmem:[%s3 + $0x38] sm:$0xf]
        %v735 = vld [vmem:[%s3 + $0x3c] sm:$0xf]
        %v752 = vunpack.c.l.b16 %v720
        %v753 = vunpack.c.l.b16 %v721
        %v754 = vunpack.c.l.b16 %v722
        %v755 = vunpack.c.l.b16 %v723
        %v756 = vunpack.c.l.b16 %v724
        %v757 = vunpack.c.l.b16 %v725
        %v758 = vunpack.c.l.b16 %v726
        %v759 = vunpack.c.l.b16 %v727
        %v760 = vunpack.c.l.b16 %v728
        %v761 = vunpack.c.l.b16 %v729
        %v762 = vunpack.c.l.b16 %v730
        %v763 = vunpack.c.l.b16 %v731
        %v764 = vunpack.c.l.b16 %v732
        %v765 = vunpack.c.l.b16 %v733
        %v766 = vunpack.c.l.b16 %v734
        %v767 = vunpack.c.l.b16 %v735
        %v768 = vpack.c.b16 %v753, %v752
        %v769 = vpack.c.b16 %v755, %v754
        %v770 = vpack.c.b16 %v757, %v756
        %v771 = vpack.c.b16 %v759, %v758
        %v772 = vpack.c.b16 %v761, %v760
        %v773 = vpack.c.b16 %v763, %v762
        %v774 = vpack.c.b16 %v765, %v764
        %v775 = vpack.c.b16 %v767, %v766
        %784 = vmatprep.subr.bf16.mxu0 0
        %785 = vmatpush1.bf16.msra.mxu0 %v768
        %786 = vmatprep.subr.bf16.mxu0 0
        %787 = vmatpush1.bf16.msra.mxu0 %v769
        %788 = vmatprep.subr.bf16.mxu0 0
        %789 = vmatpush1.bf16.msra.mxu0 %v770
        %790 = vmatprep.subr.bf16.mxu0 0
        %791 = vmatpush1.bf16.msra.mxu0 %v771
        %792 = vmatprep.subr.bf16.mxu0 0
        %793 = vmatpush1.bf16.msra.mxu0 %v772
        %794 = vmatprep.subr.bf16.mxu0 0
        %795 = vmatpush1.bf16.msra.mxu0 %v773
        %796 = vmatprep.subr.bf16.mxu0 0
        %797 = vmatpush1.bf16.msra.mxu0 %v774
        %798 = vmatprep.subr.bf16.mxu0 0
        %799 = vmatpush1.bf16.msra.mxu0 %v775
        %800 = vmatprep.subr.bf16.mxu0 0
        %801 = vmatpush1.bf16.msra.mxu0 0
        %802 = vmatprep.subr.bf16.mxu0 0
        %803 = vmatpush1.bf16.msra.mxu0 0
        %804 = vmatprep.subr.bf16.mxu0 0
        %805 = vmatpush1.bf16.msra.mxu0 0
        %806 = vmatprep.subr.bf16.mxu0 0
        %807 = vmatpush1.bf16.msra.mxu0 0
        %808 = vmatprep.subr.bf16.mxu0 0
        %809 = vmatpush1.bf16.msra.mxu0 0
        %810 = vmatprep.subr.bf16.mxu0 0
        %811 = vmatpush1.bf16.msra.mxu0 0
        %812 = vmatprep.subr.bf16.mxu0 0
        %813 = vmatpush1.bf16.msra.mxu0 0
        %814 = vmatprep.subr.bf16.mxu0 0
        %815 = vmatpush1.bf16.msra.mxu0 0
        %816 = vmatprep.mubr.bf16.mxu0 0
        %817 = vmatmul.mubr.bf16.gmra.mrb[0].mxu0 %v704
        %v818 = vpop.f32.mrb[0].mxu0
        %v819 = vadd.f32 %v200, %v818
        %v820 = vpop.f32.mrb[0].mxu0
        %v821 = vpop.f32.mrb[0].mxu0
        %v822 = vadd.f32 %v201, %v821
        %v823 = vpop.f32.mrb[0].mxu0
        %824 = vmatprep.mubr.bf16.mxu0 0
        %825 = vmatmul.mubr.bf16.gmra.mrb[0].mxu0 %v705
        %v826 = vpop.f32.mrb[0].mxu0
        %v827 = vadd.f32 %v202, %v826
        %v828 = vpop.f32.mrb[0].mxu0
        %v829 = vpop.f32.mrb[0].mxu0
        %v830 = vadd.f32 %v203, %v829
        %v831 = vpop.f32.mrb[0].mxu0
        %832 = vmatprep.mubr.bf16.mxu0 0
        %833 = vmatmul.mubr.bf16.gmra.mrb[0].mxu0 %v706
        %v834 = vpop.f32.mrb[0].mxu0
        %v835 = vadd.f32 %v204, %v834
        %v836 = vpop.f32.mrb[0].mxu0
        %v837 = vpop.f32.mrb[0].mxu0
        %v838 = vadd.f32 %v205, %v837
        %v839 = vpop.f32.mrb[0].mxu0
        %840 = vmatprep.mubr.bf16.mxu0 0
        %841 = vmatmul.mubr.bf16.gmra.mrb[0].mxu0 %v707
        %v842 = vpop.f32.mrb[0].mxu0
        %v843 = vadd.f32 %v206, %v842
        %v844 = vpop.f32.mrb[0].mxu0
        %v845 = vpop.f32.mrb[0].mxu0
        %v846 = vadd.f32 %v207, %v845
        %v847 = vpop.f32.mrb[0].mxu0
        %848 = vmatprep.mubr.bf16.mxu0 0
        %849 = vmatmul.mubr.bf16.gmra.mrb[0].mxu0 %v708
        %v850 = vpop.f32.mrb[0].mxu0
        %v851 = vadd.f32 %v208, %v850
        %v852 = vpop.f32.mrb[0].mxu0
        %v853 = vpop.f32.mrb[0].mxu0
        %v854 = vadd.f32 %v209, %v853
        %v855 = vpop.f32.mrb[0].mxu0
        %856 = vmatprep.mubr.bf16.mxu0 0
        %857 = vmatmul.mubr.bf16.gmra.mrb[0].mxu0 %v709
        %v858 = vpop.f32.mrb[0].mxu0
        %v859 = vadd.f32 %v210, %v858
        %v860 = vpop.f32.mrb[0].mxu0
        %v861 = vpop.f32.mrb[0].mxu0
        %v862 = vadd.f32 %v211, %v861
        %v863 = vpop.f32.mrb[0].mxu0
        %864 = vmatprep.mubr.bf16.mxu0 0
        %865 = vmatmul.mubr.bf16.gmra.mrb[0].mxu0 %v710
        %v866 = vpop.f32.mrb[0].mxu0
        %v867 = vadd.f32 %v212, %v866
        %v868 = vpop.f32.mrb[0].mxu0
        %v869 = vpop.f32.mrb[0].mxu0
        %v870 = vadd.f32 %v213, %v869
        %v871 = vpop.f32.mrb[0].mxu0
        %872 = vmatprep.mubr.bf16.mxu0 0
        %873 = vmatmul.mubr.bf16.gmra.mrb[0].mxu0 %v711
        %v874 = vpop.f32.mrb[0].mxu0
        %v875 = vadd.f32 %v214, %v874
        %v876 = vpop.f32.mrb[0].mxu0
        %v877 = vpop.f32.mrb[0].mxu0
        %v878 = vadd.f32 %v215, %v877
        %v879 = vpop.f32.mrb[0].mxu0
        %880 = vmatprep.mubr.bf16.mxu0 0
        %881 = vmatmul.mubr.bf16.gmra.mrb[0].mxu0 %v712
        %v882 = vpop.f32.mrb[0].mxu0
        %v883 = vadd.f32 %v216, %v882
        %v884 = vpop.f32.mrb[0].mxu0
        %v885 = vpop.f32.mrb[0].mxu0
        %v886 = vadd.f32 %v217, %v885
        %v887 = vpop.f32.mrb[0].mxu0
        %888 = vmatprep.mubr.bf16.mxu0 0
        %889 = vmatmul.mubr.bf16.gmra.mrb[0].mxu0 %v713
        %v890 = vpop.f32.mrb[0].mxu0
        %v891 = vadd.f32 %v218, %v890
        %v892 = vpop.f32.mrb[0].mxu0
        %v893 = vpop.f32.mrb[0].mxu0
        %v894 = vadd.f32 %v219, %v893
        %v895 = vpop.f32.mrb[0].mxu0
        %896 = vmatprep.mubr.bf16.mxu0 0
        %897 = vmatmul.mubr.bf16.gmra.mrb[0].mxu0 %v714
        %v898 = vpop.f32.mrb[0].mxu0
        %v899 = vadd.f32 %v220, %v898
        %v900 = vpop.f32.mrb[0].mxu0
        %v901 = vpop.f32.mrb[0].mxu0
        %v902 = vadd.f32 %v221, %v901
        %v903 = vpop.f32.mrb[0].mxu0
        %904 = vmatprep.mubr.bf16.mxu0 0
        %905 = vmatmul.mubr.bf16.gmra.mrb[0].mxu0 %v715
        %v906 = vpop.f32.mrb[0].mxu0
        %v907 = vadd.f32 %v222, %v906
        %v908 = vpop.f32.mrb[0].mxu0
        %v909 = vpop.f32.mrb[0].mxu0
        %v910 = vadd.f32 %v223, %v909
        %v911 = vpop.f32.mrb[0].mxu0
        %912 = vmatprep.mubr.bf16.mxu0 0
        %913 = vmatmul.mubr.bf16.gmra.mrb[0].mxu0 %v716
        %v914 = vpop.f32.mrb[0].mxu0
        %v915 = vadd.f32 %v224, %v914
        %v916 = vpop.f32.mrb[0].mxu0
        %v917 = vpop.f32.mrb[0].mxu0
        %v918 = vadd.f32 %v225, %v917
        %v919 = vpop.f32.mrb[0].mxu0
        %920 = vmatprep.mubr.bf16.mxu0 0
        %921 = vmatmul.mubr.bf16.gmra.mrb[0].mxu0 %v717
        %v922 = vpop.f32.mrb[0].mxu0
        %v923 = vadd.f32 %v226, %v922
        %v924 = vpop.f32.mrb[0].mxu0
        %v925 = vpop.f32.mrb[0].mxu0
        %v926 = vadd.f32 %v227, %v925
        %v927 = vpop.f32.mrb[0].mxu0
        %928 = vmatprep.mubr.bf16.mxu0 0
        %929 = vmatmul.mubr.bf16.gmra.mrb[0].mxu0 %v718
        %v930 = vpop.f32.mrb[0].mxu0
        %v931 = vadd.f32 %v228, %v930
        %v932 = vpop.f32.mrb[0].mxu0
        %v933 = vpop.f32.mrb[0].mxu0
        %v934 = vadd.f32 %v229, %v933
        %v935 = vpop.f32.mrb[0].mxu0
        %936 = vmatprep.mubr.bf16.mxu0 0
        %937 = vmatmul.mubr.bf16.gmra.mrb[0].mxu0 %v719
        %v938 = vpop.f32.mrb[0].mxu0
        %v939 = vadd.f32 %v230, %v938
        %v940 = vpop.f32.mrb[0].mxu0
        %v941 = vpop.f32.mrb[0].mxu0
        %v942 = vadd.f32 %v231, %v941
        %v943 = vpop.f32.mrb[0].mxu0
        %944 = vdwg.mxu0
        %945 = vst [vmem:[%s191] sm:$0xff] %v819
        %946 = vst [vmem:[%s191 + $0x8] sm:$0xff] %v822
        %947 = vst [vmem:[%s191 + $0x10] sm:$0xff] %v827
        %948 = vst [vmem:[%s191 + $0x18] sm:$0xff] %v830
        %949 = vst [vmem:[%s191 + $0x20] sm:$0xff] %v835
        %950 = vst [vmem:[%s191 + $0x28] sm:$0xff] %v838
        %951 = vst [vmem:[%s191 + $0x30] sm:$0xff] %v843
        %952 = vst [vmem:[%s191 + $0x38] sm:$0xff] %v846
        %953 = vst [vmem:[%s191 + $0x40] sm:$0xff] %v851
        %954 = vst [vmem:[%s191 + $0x48] sm:$0xff] %v854
        %955 = vst [vmem:[%s191 + $0x50] sm:$0xff] %v859
        %956 = vst [vmem:[%s191 + $0x58] sm:$0xff] %v862
        %957 = vst [vmem:[%s191 + $0x60] sm:$0xff] %v867
        %958 = vst [vmem:[%s191 + $0x68] sm:$0xff] %v870
        %959 = vst [vmem:[%s191 + $0x70] sm:$0xff] %v875
        %960 = vst [vmem:[%s191 + $0x78] sm:$0xff] %v878
        %961 = vst [vmem:[%s191 + $0x80] sm:$0xff] %v883
        %962 = vst [vmem:[%s191 + $0x88] sm:$0xff] %v886
        %963 = vst [vmem:[%s191 + $0x90] sm:$0xff] %v891
        %964 = vst [vmem:[%s191 + $0x98] sm:$0xff] %v894
        %965 = vst [vmem:[%s191 + $0xa0] sm:$0xff] %v899
        %966 = vst [vmem:[%s191 + $0xa8] sm:$0xff] %v902
        %967 = vst [vmem:[%s191 + $0xb0] sm:$0xff] %v907
        %968 = vst [vmem:[%s191 + $0xb8] sm:$0xff] %v910
        %969 = vst [vmem:[%s191 + $0xc0] sm:$0xff] %v915
        %970 = vst [vmem:[%s191 + $0xc8] sm:$0xff] %v918
        %971 = vst [vmem:[%s191 + $0xd0] sm:$0xff] %v923
        %972 = vst [vmem:[%s191 + $0xd8] sm:$0xff] %v926
        %973 = vst [vmem:[%s191 + $0xe0] sm:$0xff] %v931
        %974 = vst [vmem:[%s191 + $0xe8] sm:$0xff] %v934
        %975 = vst [vmem:[%s191 + $0xf0] sm:$0xff] %v939
        %976 = vst [vmem:[%s191 + $0xf8] sm:$0xff] %v942
        %s977 = sand.u32 %s115, 1
        %s978 = scalar_lea.sflag [#allocation3], %s977
        %s979 = sand.u32 %s115, 1
        %s980 = smul.addr %s979, 256
        %s981 = scalar_lea.vmem [#allocation2], %s980
        // Predicated region
        $region37: #{feed_forward_block.1} parent=35 // pred_check
          %p982 = pneg %p125
        $region38: #{feed_forward_block.1} parent=35 // pred_check_branch
          %984 = sbr.rel (%p982) target = $region40
        $region39: #{feed_forward_block.1} parent=35 // pred_region
          %s985 = smul.u32 32, %s18
          %s987 = ssub.s32 4096, 4096
          %988 = vsyncadd %s978, %s987
          %s989 = smul.addr %s985, 128
          %s990 = scalar_lea.hbm %s4, %s989
          %s991 = sshll.u32 %s981, 4
          %s992 = int_to_ptr.vmem [resolvable:$true] %s991
          %997 = dma.vmem_to_hbm [thread:$0]  %s992, 4096, %s990, %s978, 128, 128, 8
        $region40: #{feed_forward_block.1} parent=35 // pred_fallthru
          _
      $region36: #{feed_forward_block.1} parent=5 // pred_fallthru
        _
      %p998 = scmp.le.s32.totalorder 2, %s13
      // Predicated region
      $region41: #{feed_forward_block.1} parent=5 // pred_check
        %p999 = pneg %p998
      $region42: #{feed_forward_block.1} parent=5 // pred_check_branch
        %1001 = sbr.rel (%p999) target = $region44
      $region43: #{feed_forward_block.1} parent=5 // pred_region
        %s1002 = ssub.s32 %s13, 2
        // Predicated region
        $region45: #{feed_forward_block.1} parent=43 // pred_check
          %p1003 = pneg %p131
        $region46: #{feed_forward_block.1} parent=43 // pred_check_branch
          %1005 = sbr.rel (%p1003) target = $region48
        $region47: #{feed_forward_block.1} parent=43 // pred_region
          %s1006 = sand.u32 %s116, 1
          %s1007 = scalar_lea.sflag [#allocation3], %s1006
          %s1008 = sand.u32 %s116, 1
          %s1009 = smul.addr %s1008, 256
          %s1010 = scalar_lea.vmem [#allocation2], %s1009
          %1011 = dma.done %s1007, 4096
        $region48: #{feed_forward_block.1} parent=43 // pred_fallthru
          _
      $region44: #{feed_forward_block.1} parent=5 // pred_fallthru
        _
    $region6: #{feed_forward_block.1} parent=1 // loop_footer
      %s17 = sadd.s32 1, %s13
    $region7: #{feed_forward_block.1} parent=1 // loop_footer_branch
      %12 = sbr.rel target = $region3
    $region8: #{feed_forward_block.1} parent=1 // loop_exit
      _
    %1012 = vsyncpa [#allocation3], 1
    %s1013 = scalar_lea.sflag [#allocation3], 1
    %1014 = vsyncpa %s1013, 1

</llo_original>
